<compile_context>
chip_gen: v6e
topology: v6e:2x2x1
jax: 0.10.0
libtpu: 0.0.40
codegen_flags: <defaults>
</compile_context>

<pallas_src>
import jax
import jax.numpy as jnp
from jax.experimental import pallas as pl
from jax.experimental.pallas import tpu as pltpu

IN_FEATURES = 8
OUT_FEATURES = 8
LANE = 128
PACK = LANE // IN_FEATURES   # 16 samples packed per 128-lane row
TILE_ROWS = 4096             # 4096 x 128 x 4 B = 2 MiB per activation buffer


def packed_linear_kernel(wbd_ref, bias_ref, x_ref, y_ref):
    # wbd_ref:  [128, 128] block-diagonal weight (16 x W^T), VMEM-resident
    # bias_ref: [1, 128]   bias tiled 16x, VMEM-resident
    # x_ref:    [tr, 128]  one batch tile (16 samples per row)
    # y_ref:    [tr, 128]
    y = jnp.dot(x_ref[...], wbd_ref[...], preferred_element_type=jnp.float32)
    y_ref[...] = (y + bias_ref[...]).astype(y_ref.dtype)


def simple_model_forward(x, weight, bias, *, tile_rows=TILE_ROWS):
    """y = x @ weight.T + bias  (torch.nn.Linear(8, 8) semantics).

    x: [B, 8] f32; weight: [8, 8] (PyTorch [out, in] layout); bias: [8].
    """
    B = x.shape[0]

    # Pack 16 samples per 128-lane row.  Pad B up to a multiple of 16 only
    # (at most 15 rows of padding), then the reshape is free (row-major).
    padded_b = pl.cdiv(B, PACK) * PACK
    if padded_b != B:
        x = jnp.pad(x, ((0, padded_b - B), (0, 0)))
    rows = padded_b // PACK
    x_packed = x.reshape(rows, LANE)

    # Block-diagonal weight (one W^T per packed sample) and tiled bias; built
    # once (64 KiB), constant index_map keeps them VMEM-resident across tiles.
    w_blockdiag = jnp.kron(jnp.eye(PACK, dtype=x.dtype), weight.T.astype(x.dtype))
    bias_tiled = jnp.tile(bias.astype(x.dtype), PACK).reshape(1, LANE)

    # Batch tile: full extent if small, otherwise clamp to a multiple of 8
    # sublanes; the ragged final block (rows % tr != 0) is masked by Pallas,
    # so there is no over-padding of the whole batch to a tile multiple.
    if rows <= tile_rows:
        tr = rows
    else:
        tr = max(8, (min(tile_rows, rows) // 8) * 8)
    grid = (pl.cdiv(rows, tr),)

    bytes_accessed = (2 * rows * LANE + LANE * LANE + LANE) * x.dtype.itemsize

    y_packed = pl.pallas_call(
        packed_linear_kernel,
        out_shape=jax.ShapeDtypeStruct((rows, LANE), x.dtype),
        grid_spec=pl.GridSpec(
            grid=grid,
            in_specs=[
                # Weight & bias: constant index_map -> loaded once, resident.
                pl.BlockSpec((LANE, LANE), lambda i: (0, 0)),
                pl.BlockSpec((1, LANE), lambda i: (0, 0)),
                # Activations: batch rows tiled along the sublane axis.
                pl.BlockSpec((tr, LANE), lambda i: (i, 0)),
            ],
            out_specs=pl.BlockSpec((tr, LANE), lambda i: (i, 0)),
        ),
        compiler_params=pltpu.CompilerParams(
            dimension_semantics=("parallel",),
        ),
        cost_estimate=pl.CostEstimate(
            flops=2 * rows * LANE * LANE,
            transcendentals=0,
            bytes_accessed=bytes_accessed,
        ),
    )(w_blockdiag, bias_tiled, x_packed)

    y = y_packed.reshape(padded_b, OUT_FEATURES)   # free reshape back
    if padded_b != B:
        y = y[:B]
    return y


if __name__ == "__main__":
    key = jax.random.PRNGKey(0)
    k_x, k_w, k_b = jax.random.split(key, 3)

    batch = 8
    # Deterministic parameter init (mimics nn.Linear uniform(-1/sqrt(in), 1/sqrt(in)))
    bound = 1.0 / jnp.sqrt(jnp.float32(IN_FEATURES))
    weight = jax.random.uniform(
        k_w, (OUT_FEATURES, IN_FEATURES), jnp.float32, -bound, bound
    )
    bias = jax.random.uniform(k_b, (OUT_FEATURES,), jnp.float32, -bound, bound)
    x = jax.random.normal(k_x, (batch, IN_FEATURES), jnp.float32)

    y = simple_model_forward(x, weight, bias)
    y = jax.block_until_ready(y)

    # Reference check in plain JAX
    y_ref = x @ weight.T + bias
    assert y.shape == (batch, OUT_FEATURES)
    assert jnp.allclose(y, y_ref, atol=1e-5, rtol=1e-5)

    print("KERNEL_OK")
</pallas_src>

<mosaic_0001>
module attributes {stable_mosaic.version = 11 : i64} {
  func.func @packed_linear_kernel(%arg0: i32, %arg1: memref<128x128xf32, #tpu.memory_space<vmem>>, %arg2: memref<1x128xf32, #tpu.memory_space<vmem>>, %arg3: memref<1x128xf32, #tpu.memory_space<vmem>>, %arg4: memref<1x128xf32, #tpu.memory_space<vmem>>) attributes {dimension_semantics = [#tpu.dimension_semantics<parallel>], iteration_bounds = array<i64: 1>, scalar_prefetch = 0 : i64, scratch_operands = 0 : i64, tpu.core_type = #tpu.core_type<tc>, window_params = [{pipeline_mode = #tpu.pipeline_mode<synchronous>, transform_indices = @transform_0, window_bounds = array<i64: 128, 128>}, {pipeline_mode = #tpu.pipeline_mode<synchronous>, transform_indices = @transform_1, window_bounds = array<i64: 1, 128>}, {transform_indices = @transform_2, window_bounds = array<i64: 1, 128>}, {transform_indices = @transform_3, window_bounds = array<i64: 1, 128>}]} {
    %c0 = arith.constant 0 : index
    %c0_0 = arith.constant 0 : index
    %0 = vector.load %arg3[%c0, %c0_0] : memref<1x128xf32, #tpu.memory_space<vmem>>, vector<1x128xf32>
    %c0_1 = arith.constant 0 : index
    %c0_2 = arith.constant 0 : index
    %1 = vector.load %arg1[%c0_1, %c0_2] : memref<128x128xf32, #tpu.memory_space<vmem>>, vector<128x128xf32>
    %cst = arith.constant dense<0.000000e+00> : vector<1x128xf32>
    %2 = tpu.matmul %0, %1, %cst {dimension_numbers = #tpu.dot_dimension_numbers<[1], [0], [0], [1], [0, 0, 1, 1], [], []>} : vector<1x128xf32>, vector<128x128xf32>, vector<1x128xf32> -> vector<1x128xf32>
    %c0_3 = arith.constant 0 : index
    %c0_4 = arith.constant 0 : index
    %3 = vector.load %arg2[%c0_3, %c0_4] : memref<1x128xf32, #tpu.memory_space<vmem>>, vector<1x128xf32>
    %4 = arith.addf %2, %3 : vector<1x128xf32>
    %c0_5 = arith.constant 0 : index
    %c0_6 = arith.constant 0 : index
    %5 = vector.load %arg4[%c0_5, %c0_6] : memref<1x128xf32, #tpu.memory_space<vmem>>, vector<1x128xf32>
    tpu.vector_store %arg4[%c0_5, %c0_6], %4 {strides = array<i32>} : memref<1x128xf32, #tpu.memory_space<vmem>>, vector<1x128xf32>,
    return
  }
  func.func @transform_0(%arg0: i32) -> (i32, i32) {
    %c0_i32 = arith.constant 0 : i32
    %c0_i32_0 = arith.constant 0 : i32
    %c0_i32_1 = arith.constant 0 : i32
    return %c0_i32, %c0_i32_0 : i32, i32
  }
  func.func @transform_1(%arg0: i32) -> (i32, i32) {
    %c0_i32 = arith.constant 0 : i32
    %c0_i32_0 = arith.constant 0 : i32
    %c0_i32_1 = arith.constant 0 : i32
    return %c0_i32, %c0_i32_0 : i32, i32
  }
  func.func @transform_2(%arg0: i32) -> (i32, i32) {
    %c0_i32 = arith.constant 0 : i32
    %c0_i32_0 = arith.constant 0 : i32
    return %arg0, %c0_i32 : i32, i32
  }
  func.func @transform_3(%arg0: i32) -> (i32, i32) {
    %c0_i32 = arith.constant 0 : i32
    %c0_i32_0 = arith.constant 0 : i32
    return %arg0, %c0_i32 : i32, i32
  }
}

</mosaic_0001>

<llo_original>
// kernel: tpu_custom_call.1
$region0: #{tpu_custom_call.1}
  #allocation0 [shape = 'u32[]', space=smem, size = 0x4, offset = 0x4, fixed_abs, tag = 'smem constant byte address 0x4 - core index']
  #allocation1 [shape = 'u32[144,128]{1,0:T(1,128)}', space=vmem, size = 0x12000, scoped, tag = 'internal scratch']
  %s0 = inlined_call_operand.hbm [shape: f32[128,128], index: 0, kind: input, shape index: {}]
  %s1 = inlined_call_operand.vmem [shape: f32[1,128], index: 1, kind: input, shape index: {}]
  %s2 = inlined_call_operand.vmem [shape: f32[1,128], index: 2, kind: input, shape index: {}]
  %s3 = inlined_call_operand.hbm [shape: f32[1,128], index: 3, kind: output, shape index: {}]
  %s4 = sld [smem:[#allocation0]]
  $region26: #{tpu_custom_call.1} parent=0
    _
  %s6 = ssub.s32 1, %s4
  %s7 = scalar_select 0, %s6, %s4
  $region1: #{tpu_custom_call.1} parent=0
    #allocation2 [shape = 'u8[65536]{0}', space=vmem, size = 0x10000, scoped, tag = 'input window, operand 0, single buffered']
    #allocation3 [shape = 's32[1]{0}', space=sflag, size = 0x4, scoped, tag = 'scoped memory for tpu_custom_call.1']
    #allocation4 [shape = 's32[1]{0}', space=sflag, size = 0x4, scoped, tag = 'scoped memory for tpu_custom_call.1']
    #allocation5 [shape = 'u8[512]{0}', space=vmem, size = 0x400, scoped, tag = 'output window, operand 0, single buffered']
    %8 = vsyncpa [#allocation3], 0
    %9 = vsyncpa [#allocation4], 0
    // Predicated region
    $region2: #{tpu_custom_call.1} parent=1 // pred_check
      _
    $region3: #{tpu_custom_call.1} parent=1 // pred_check_branch
      %11 = sbr.rel (0) target = $region5
    $region4: #{tpu_custom_call.1} parent=1 // pred_region
      %s13 = ssub.s32 2048, 2048
      %14 = vsyncadd [#allocation3], %s13
      %s15 = sshll.u32 [#allocation2], 4
      %s16 = int_to_ptr.vmem [resolvable:$true] %s15
      %21 = dma.hbm_to_vmem [thread:$0]  %s0, 2048, %s16, [#allocation3], 128, 128, 8
    $region5: #{tpu_custom_call.1} parent=1 // pred_fallthru
      _
    // Predicated region
    $region6: #{tpu_custom_call.1} parent=1 // pred_check
      _
    $region7: #{tpu_custom_call.1} parent=1 // pred_check_branch
      %23 = sbr.rel (0) target = $region9
    $region8: #{tpu_custom_call.1} parent=1 // pred_region
      _
    $region9: #{tpu_custom_call.1} parent=1 // pred_fallthru
      _
    // Predicated region
    $region10: #{tpu_custom_call.1} parent=1 // pred_check
      _
    $region11: #{tpu_custom_call.1} parent=1 // pred_check_branch
      %25 = sbr.rel (0) target = $region13
    $region12: #{tpu_custom_call.1} parent=1 // pred_region
      _
    $region13: #{tpu_custom_call.1} parent=1 // pred_fallthru
      _
    // Predicated region
    $region14: #{tpu_custom_call.1} parent=1 // pred_check
      _
    $region15: #{tpu_custom_call.1} parent=1 // pred_check_branch
      %27 = sbr.rel (0) target = $region17
    $region16: #{tpu_custom_call.1} parent=1 // pred_region
      %28 = dma.done [#allocation3], 2048
    $region17: #{tpu_custom_call.1} parent=1 // pred_fallthru
      _
    %v29 = vld [vmem:[%s2] sm:$0x1]
    %v30 = vld [vmem:[#allocation2] sm:$0xff]
    %v31 = vld [vmem:[#allocation2 + $0x8] sm:$0xff]
    %v32 = vld [vmem:[#allocation2 + $0x10] sm:$0xff]
    %v33 = vld [vmem:[#allocation2 + $0x18] sm:$0xff]
    %v34 = vld [vmem:[#allocation2 + $0x20] sm:$0xff]
    %v35 = vld [vmem:[#allocation2 + $0x28] sm:$0xff]
    %v36 = vld [vmem:[#allocation2 + $0x30] sm:$0xff]
    %v37 = vld [vmem:[#allocation2 + $0x38] sm:$0xff]
    %v38 = vld [vmem:[#allocation2 + $0x40] sm:$0xff]
    %v39 = vld [vmem:[#allocation2 + $0x48] sm:$0xff]
    %v40 = vld [vmem:[#allocation2 + $0x50] sm:$0xff]
    %v41 = vld [vmem:[#allocation2 + $0x58] sm:$0xff]
    %v42 = vld [vmem:[#allocation2 + $0x60] sm:$0xff]
    %v43 = vld [vmem:[#allocation2 + $0x68] sm:$0xff]
    %v44 = vld [vmem:[#allocation2 + $0x70] sm:$0xff]
    %v45 = vld [vmem:[#allocation2 + $0x78] sm:$0xff]
    %v46 = vld [vmem:[%s1] sm:$0x1]
    %47 = vmatprep.subr.mxu0 0.0
    %48 = vmatpush1.msra.mxu0 %v45
    %49 = vmatprep.subr.mxu0 0.0
    %50 = vmatpush1.msra.mxu0 %v44
    %51 = vmatprep.subr.mxu0 0.0
    %52 = vmatpush1.msra.mxu0 %v43
    %53 = vmatprep.subr.mxu0 0.0
    %54 = vmatpush1.msra.mxu0 %v42
    %55 = vmatprep.subr.mxu0 0.0
    %56 = vmatpush1.msra.mxu0 %v41
    %57 = vmatprep.subr.mxu0 0.0
    %58 = vmatpush1.msra.mxu0 %v40
    %59 = vmatprep.subr.mxu0 0.0
    %60 = vmatpush1.msra.mxu0 %v39
    %61 = vmatprep.subr.mxu0 0.0
    %62 = vmatpush1.msra.mxu0 %v38
    %63 = vmatprep.subr.mxu0 0.0
    %64 = vmatpush1.msra.mxu0 %v37
    %65 = vmatprep.subr.mxu0 0.0
    %66 = vmatpush1.msra.mxu0 %v36
    %67 = vmatprep.subr.mxu0 0.0
    %68 = vmatpush1.msra.mxu0 %v35
    %69 = vmatprep.subr.mxu0 0.0
    %70 = vmatpush1.msra.mxu0 %v34
    %71 = vmatprep.subr.mxu0 0.0
    %72 = vmatpush1.msra.mxu0 %v33
    %73 = vmatprep.subr.mxu0 0.0
    %74 = vmatpush1.msra.mxu0 %v32
    %75 = vmatprep.subr.mxu0 0.0
    %76 = vmatpush1.msra.mxu0 %v31
    %77 = vmatprep.subr.mxu0 0.0
    %78 = vmatpush1.msra.mxu0 %v30
    %79 = vmatprep.subr.mxu0 0.0
    %80 = vmatpush2.msra.mxu0 0.0
    %81 = vmatprep.subr.mxu0 0.0
    %82 = vmatpush2.msra.mxu0 0.0
    %83 = vmatprep.subr.mxu0 0.0
    %84 = vmatpush2.msra.mxu0 0.0
    %85 = vmatprep.subr.mxu0 0.0
    %86 = vmatpush2.msra.mxu0 0.0
    %87 = vmatprep.subr.mxu0 0.0
    %88 = vmatpush2.msra.mxu0 0.0
    %89 = vmatprep.subr.mxu0 0.0
    %90 = vmatpush2.msra.mxu0 0.0
    %91 = vmatprep.subr.mxu0 0.0
    %92 = vmatpush2.msra.mxu0 0.0
    %93 = vmatprep.subr.mxu0 0.0
    %94 = vmatpush2.msra.mxu0 0.0
    %95 = vmatprep.subr.mxu0 0.0
    %96 = vmatpush2.msra.mxu0 0.0
    %97 = vmatprep.subr.mxu0 0.0
    %98 = vmatpush2.msra.mxu0 0.0
    %99 = vmatprep.subr.mxu0 0.0
    %100 = vmatpush2.msra.mxu0 0.0
    %101 = vmatprep.subr.mxu0 0.0
    %102 = vmatpush2.msra.mxu0 0.0
    %103 = vmatprep.subr.mxu0 0.0
    %104 = vmatpush2.msra.mxu0 0.0
    %105 = vmatprep.subr.mxu0 0.0
    %106 = vmatpush2.msra.mxu0 0.0
    %107 = vmatprep.subr.mxu0 0.0
    %108 = vmatpush2.msra.mxu0 0.0
    %109 = vmatprep.subr.mxu0 0.0
    %110 = vmatpush2.msra.mxu0 0.0
    %111 = vmatprep.mubr.f32.mxu0 0.0
    %112 = vmatmul.mubr.f32.gmra.mxu0 %v29
    %v113 = vpop.f32.mrf.mxu0
    %v114 = vadd.f32 %v46, %v113
    %v115 = vpop.f32.mrf.mxu0
    %116 = vdwg.mxu0
    %117 = vst [vmem:[#allocation5] sm:$0x1] %v114
    // Predicated region
    $region18: #{tpu_custom_call.1} parent=1 // pred_check
      _
    $region19: #{tpu_custom_call.1} parent=1 // pred_check_branch
      %119 = sbr.rel (0) target = $region21
    $region20: #{tpu_custom_call.1} parent=1 // pred_region
      %s121 = ssub.s32 16, 16
      %122 = vsyncadd [#allocation4], %s121
      %s124 = sshll.u32 [#allocation5], 4
      %s125 = int_to_ptr.vmem [resolvable:$true] %s124
      %127 = dma.vmem_to_hbm [thread:$0]  %s125, 16, %s3, [#allocation4]
    $region21: #{tpu_custom_call.1} parent=1 // pred_fallthru
      _
    // Predicated region
    $region22: #{tpu_custom_call.1} parent=1 // pred_check
      _
    $region23: #{tpu_custom_call.1} parent=1 // pred_check_branch
      %129 = sbr.rel (0) target = $region25
    $region24: #{tpu_custom_call.1} parent=1 // pred_region
      %130 = dma.done [#allocation4], 16
    $region25: #{tpu_custom_call.1} parent=1 // pred_fallthru
      _
    %131 = vsyncpa [#allocation3], 1
    %132 = vsyncpa [#allocation4], 1

</llo_original>
